<compile_context>
chip_gen: v5e
topology: v5e:2x2
jax: 0.10.0
libtpu: 0.0.40
codegen_flags: <defaults>
</compile_context>

<pallas_src>
import jax
import jax.numpy as jnp
import numpy as np
from jax.experimental import pallas as pl
from jax.experimental.pallas import tpu as pltpu


# --------------------------------------------------------------------------
# Kernels
# --------------------------------------------------------------------------

def _qkv_proj_kernel(x_ref, w_ref, o_ref):
    # x: (tm, C) bf16, w: (C, 3C) bf16  ->  o: (tm, 3C) bf16 (f32 accumulate)
    o_ref[...] = jnp.dot(
        x_ref[...], w_ref[...], preferred_element_type=jnp.float32
    ).astype(o_ref.dtype)


def _make_attn_kernel(scale: float):
    def kernel(q_ref, k_ref, v_ref, attn_ref, ctx_ref):
        # refs are (1, 1, N, hd) / (1, 1, N, N) blocks for one (batch, head).
        q = q_ref[0, 0]                       # (N, hd) bf16
        k = k_ref[0, 0]                       # (N, hd) bf16
        v = v_ref[0, 0]                       # (N, hd) bf16

        # scores: contract head_dim of q and k (no transpose op), f32 accum.
        s = jax.lax.dot_general(
            q, k, (((1,), (1,)), ((), ())),
            preferred_element_type=jnp.float32) * scale     # (N, N) f32

        # numerically stable softmax; keep the math in f32 (v5e has no bf16 VPU/EUP).
        s = s - jnp.max(s, axis=-1, keepdims=True)
        p = jnp.exp(s)
        denom = jnp.sum(p, axis=-1, keepdims=True)
        p = p * pl.reciprocal(denom, approx=True)           # EUP, ~free

        # single lane-dense store of the whole (N, N) block (f32 like torch).
        attn_ref[0, 0] = p.astype(attn_ref.dtype)

        # context for this head; bf16 operands on the MXU, f32 accumulate.
        ctx_ref[0, 0] = jnp.dot(
            p.astype(v.dtype), v, preferred_element_type=jnp.float32
        ).astype(ctx_ref.dtype)

    return kernel


def _out_proj_kernel(x_ref, w_ref, b_ref, o_ref):
    # x: (tm, C) bf16, w: (C, C) bf16, b: (1, C) f32  ->  o: (tm, C)
    acc = jnp.dot(x_ref[...], w_ref[...], preferred_element_type=jnp.float32)
    o_ref[...] = (acc + b_ref[...].astype(jnp.float32)).astype(o_ref.dtype)


# --------------------------------------------------------------------------
# Wrapper
# --------------------------------------------------------------------------

def _row_tile(m: int, max_rows: int = 256) -> int:
    """Pick a row tile that either equals m or is a multiple of 8 dividing m."""
    if m <= max_rows:
        return m
    t = max_rows - (max_rows % 8)
    while t >= 8:
        if m % t == 0:
            return t
        t -= 8
    return m


def dino_attention_pallas(x, w_qkv, w_proj, b_proj, num_heads,
                          compute_dtype=jnp.bfloat16):
    """x: (B, N, C). w_qkv: (3C, C) (nn.Linear layout), w_proj: (C, C), b_proj: (C,)."""
    B, N, C = x.shape
    assert C % num_heads == 0, "C must be divisible by num_heads"
    hd = C // num_heads
    scale = hd ** (-0.5)
    M = B * N
    out_dtype = x.dtype

    # nn.Linear does y = x @ W.T -> pre-transpose once; bf16 operands.
    wqkv_t = w_qkv.T.astype(compute_dtype)        # (C, 3C) fused QKV weight
    wp_t = w_proj.T.astype(compute_dtype)         # (C, C)
    bp = b_proj.reshape(1, C).astype(jnp.float32) # (1, C)
    x_flat = x.reshape(M, C).astype(compute_dtype)

    tm = _row_tile(M)
    params_1d = pltpu.CompilerParams(
        dimension_semantics=("parallel",),
        vmem_limit_bytes=48 * 1024 * 1024)
    params_2d = pltpu.CompilerParams(
        dimension_semantics=("parallel", "parallel"),
        vmem_limit_bytes=48 * 1024 * 1024)

    # ---- 1) fused QKV projection over all B*N rows (one wide MXU matmul) ----
    qkv = pl.pallas_call(
        _qkv_proj_kernel,
        out_shape=jax.ShapeDtypeStruct((M, 3 * C), compute_dtype),
        grid=(M // tm,),
        in_specs=[
            pl.BlockSpec((tm, C), lambda i: (i, 0)),
            pl.BlockSpec((C, 3 * C), lambda i: (0, 0)),
        ],
        out_specs=pl.BlockSpec((tm, 3 * C), lambda i: (i, 0)),
        compiler_params=params_1d,
    )(x_flat, wqkv_t)

    # Rearrange into contiguous (B, H, N, hd) tiles for the attention kernel.
    qkv_sbhnd = qkv.reshape(B, N, 3, num_heads, hd).transpose(2, 0, 3, 1, 4)
    q, k, v = qkv_sbhnd[0], qkv_sbhnd[1], qkv_sbhnd[2]   # each (B, H, N, hd)

    # ---- 2) attention, gridded over (batch, head); both axes parallel ----
    attn, ctx = pl.pallas_call(
        _make_attn_kernel(scale),
        out_shape=(
            # attn exported in f32 (matches the f32 torch return); at very
            # large N this could be emitted in bf16 to halve HBM write traffic.
            jax.ShapeDtypeStruct((B, num_heads, N, N), jnp.float32),
            jax.ShapeDtypeStruct((B, num_heads, N, hd), compute_dtype),
        ),
        grid=(B, num_heads),
        in_specs=[
            pl.BlockSpec((1, 1, N, hd), lambda b, h: (b, h, 0, 0)),
            pl.BlockSpec((1, 1, N, hd), lambda b, h: (b, h, 0, 0)),
            pl.BlockSpec((1, 1, N, hd), lambda b, h: (b, h, 0, 0)),
        ],
        out_specs=(
            pl.BlockSpec((1, 1, N, N), lambda b, h: (b, h, 0, 0)),
            pl.BlockSpec((1, 1, N, hd), lambda b, h: (b, h, 0, 0)),
        ),
        compiler_params=params_2d,
    )(q, k, v)

    # Re-assemble heads on the lane axis (wrapper-side layout plumbing, not
    # an in-kernel concatenate) and run the output projection over B*N rows.
    ctx_flat = ctx.transpose(0, 2, 1, 3).reshape(M, C).astype(compute_dtype)

    # ---- 3) output projection (+ bias) over all B*N rows ----
    out = pl.pallas_call(
        _out_proj_kernel,
        out_shape=jax.ShapeDtypeStruct((M, C), out_dtype),
        grid=(M // tm,),
        in_specs=[
            pl.BlockSpec((tm, C), lambda i: (i, 0)),
            pl.BlockSpec((C, C), lambda i: (0, 0)),
            pl.BlockSpec((1, C), lambda i: (0, 0)),
        ],
        out_specs=pl.BlockSpec((tm, C), lambda i: (i, 0)),
        compiler_params=params_1d,
    )(ctx_flat, wp_t, bp)

    return out.reshape(B, N, C), attn


# --------------------------------------------------------------------------
# Pure-JAX reference (mirrors the PyTorch forward)
# --------------------------------------------------------------------------

def dino_attention_ref(x, w_qkv, w_proj, b_proj, num_heads):
    B, N, C = x.shape
    hd = C // num_heads
    scale = hd ** (-0.5)
    qkv = (x @ w_qkv.T).reshape(B, N, 3, num_heads, hd).transpose(2, 0, 3, 1, 4)
    q, k, v = qkv[0], qkv[1], qkv[2]
    attn = jnp.einsum('bhnd,bhmd->bhnm', q, k) * scale
    attn = jax.nn.softmax(attn, axis=-1)
    out = jnp.einsum('bhnm,bhmd->bhnd', attn, v).transpose(0, 2, 1, 3).reshape(B, N, C)
    out = out @ w_proj.T + b_proj
    return out, attn


if __name__ == "__main__":
    # Small shapes consistent with the module (from_superclass uses dim=32).
    B, N, C = 2, 8, 32
    num_heads = 8          # -> head_dim = 4

    key = jax.random.PRNGKey(0)
    kx, kqkv, kproj, kb = jax.random.split(key, 4)

    x = jax.random.normal(kx, (B, N, C), dtype=jnp.float32)
    # Deterministic synthetic params (nn.Linear shapes: (out, in)); qkv_bias=False.
    w_qkv = 0.05 * jax.random.normal(kqkv, (3 * C, C), dtype=jnp.float32)
    w_proj = 0.05 * jax.random.normal(kproj, (C, C), dtype=jnp.float32)
    b_proj = 0.05 * jax.random.normal(kb, (C,), dtype=jnp.float32)

    out, attn = dino_attention_pallas(x, w_qkv, w_proj, b_proj, num_heads)
    out = jax.block_until_ready(out)
    attn = jax.block_until_ready(attn)

    out_ref, attn_ref = dino_attention_ref(x, w_qkv, w_proj, b_proj, num_heads)

    assert out.shape == (B, N, C) and attn.shape == (B, num_heads, N, N)
    np.testing.assert_allclose(np.asarray(out), np.asarray(out_ref),
                               rtol=2e-2, atol=2e-2)
    np.testing.assert_allclose(np.asarray(attn), np.asarray(attn_ref),
                               rtol=2e-2, atol=2e-2)

    print("KERNEL_OK")
</pallas_src>

<mosaic_0001>
module attributes {stable_mosaic.version = 11 : i64} {
  func.func @_qkv_proj_kernel(%arg0: i32, %arg1: memref<16x32xbf16, #tpu.memory_space<vmem>>, %arg2: memref<32x96xbf16, #tpu.memory_space<vmem>>, %arg3: memref<16x96xbf16, #tpu.memory_space<vmem>>) attributes {dimension_semantics = [#tpu.dimension_semantics<parallel>], iteration_bounds = array<i64: 1>, scalar_prefetch = 0 : i64, scratch_operands = 0 : i64, tpu.core_type = #tpu.core_type<tc>, window_params = [{transform_indices = @transform_0, window_bounds = array<i64: 16, 32>}, {pipeline_mode = #tpu.pipeline_mode<synchronous>, transform_indices = @transform_1, window_bounds = array<i64: 32, 96>}, {transform_indices = @transform_2, window_bounds = array<i64: 16, 96>}]} {
    %c0 = arith.constant 0 : index
    %c0_0 = arith.constant 0 : index
    %0 = vector.load %arg1[%c0, %c0_0] : memref<16x32xbf16, #tpu.memory_space<vmem>>, vector<16x32xbf16>
    %c0_1 = arith.constant 0 : index
    %c0_2 = arith.constant 0 : index
    %1 = vector.load %arg2[%c0_1, %c0_2] : memref<32x96xbf16, #tpu.memory_space<vmem>>, vector<32x96xbf16>
    %cst = arith.constant dense<0.000000e+00> : vector<16x96xf32>
    %2 = tpu.matmul %0, %1, %cst {dimension_numbers = #tpu.dot_dimension_numbers<[1], [0], [0], [1], [0, 0, 1, 1], [], []>} : vector<16x32xbf16>, vector<32x96xbf16>, vector<16x96xf32> -> vector<16x96xf32>
    %3 = arith.truncf %2 : vector<16x96xf32> to vector<16x96xbf16>
    %c0_3 = arith.constant 0 : index
    %c0_4 = arith.constant 0 : index
    %4 = vector.load %arg3[%c0_3, %c0_4] : memref<16x96xbf16, #tpu.memory_space<vmem>>, vector<16x96xbf16>
    tpu.vector_store %arg3[%c0_3, %c0_4], %3 {strides = array<i32>} : memref<16x96xbf16, #tpu.memory_space<vmem>>, vector<16x96xbf16>,
    return
  }
  func.func @transform_0(%arg0: i32) -> (i32, i32) {
    %c0_i32 = arith.constant 0 : i32
    %c0_i32_0 = arith.constant 0 : i32
    return %arg0, %c0_i32 : i32, i32
  }
  func.func @transform_1(%arg0: i32) -> (i32, i32) {
    %c0_i32 = arith.constant 0 : i32
    %c0_i32_0 = arith.constant 0 : i32
    %c0_i32_1 = arith.constant 0 : i32
    return %c0_i32, %c0_i32_0 : i32, i32
  }
  func.func @transform_2(%arg0: i32) -> (i32, i32) {
    %c0_i32 = arith.constant 0 : i32
    %c0_i32_0 = arith.constant 0 : i32
    return %arg0, %c0_i32 : i32, i32
  }
}

</mosaic_0001>

<llo_original>
// kernel: tpu_custom_call.1
$region0: #{tpu_custom_call.1}
  #allocation0 [shape = 'u32[]', space=smem, size = 0x4, offset = 0x4, fixed_abs, tag = 'smem constant byte address 0x4 - core index']
  #allocation1 [shape = 'u32[72,128]{1,0:T(1,128)}', space=vmem, size = 0x9000, scoped, tag = 'internal scratch']
  %s0 = inlined_call_operand.hbm [shape: bf16[16,32], index: 0, kind: input, shape index: {}]
  %s1 = inlined_call_operand.hbm [shape: bf16[32,96], index: 1, kind: input, shape index: {}]
  %s2 = inlined_call_operand.hbm [shape: bf16[16,96], index: 2, kind: output, shape index: {}]
  %s3 = sld [smem:[#allocation0]]
  $region26: #{tpu_custom_call.1} parent=0
    _
  %s5 = ssub.s32 1, %s3
  %s6 = scalar_select 0, %s5, %s3
  $region1: #{tpu_custom_call.1} parent=0
    #allocation2 [shape = 'u8[4096]{0}', space=vmem, size = 0x1000, scoped, tag = 'input window, operand 0, single buffered']
    #allocation3 [shape = 's32[1]{0}', space=sflag, size = 0x4, scoped, tag = 'scoped memory for tpu_custom_call.1']
    #allocation4 [shape = 's32[1]{0}', space=sflag, size = 0x4, scoped, tag = 'scoped memory for tpu_custom_call.1']
    #allocation5 [shape = 'u8[8192]{0}', space=vmem, size = 0x2000, scoped, tag = 'input window, operand 1, single buffered']
    #allocation6 [shape = 's32[1]{0}', space=sflag, size = 0x4, scoped, tag = 'scoped memory for tpu_custom_call.1']
    #allocation7 [shape = 'u8[4096]{0}', space=vmem, size = 0x1000, scoped, tag = 'output window, operand 0, single buffered']
    %7 = vsyncpa [#allocation3], 0
    %8 = vsyncpa [#allocation6], 0
    %9 = vsyncpa [#allocation4], 0
    // Predicated region
    $region2: #{tpu_custom_call.1} parent=1 // pred_check
      _
    $region3: #{tpu_custom_call.1} parent=1 // pred_check_branch
      %11 = sbr.rel (0) target = $region5
    $region4: #{tpu_custom_call.1} parent=1 // pred_region
      %13 = vsyncadd [#allocation3], 0
      %s14 = sshll.u32 %s0, 4
      %s15 = int_to_ptr.hbm [resolvable:$true] %s14
      %s16 = sshll.u32 [#allocation2], 4
      %s17 = int_to_ptr.vmem [resolvable:$true] %s16
      %22 = dma.hbm_to_vmem [thread:$0]  %s15, 128, %s17, [#allocation3], 64, 64, 4
    $region5: #{tpu_custom_call.1} parent=1 // pred_fallthru
      _
    // Predicated region
    $region6: #{tpu_custom_call.1} parent=1 // pred_check
      _
    $region7: #{tpu_custom_call.1} parent=1 // pred_check_branch
      %24 = sbr.rel (0) target = $region9
    $region8: #{tpu_custom_call.1} parent=1 // pred_region
      %26 = vsyncadd [#allocation6], 0
      %s27 = sshll.u32 %s1, 4
      %s28 = int_to_ptr.hbm [resolvable:$true] %s27
      %s29 = sshll.u32 [#allocation5], 4
      %s30 = int_to_ptr.vmem [resolvable:$true] %s29
      %35 = dma.hbm_to_vmem [thread:$0]  %s28, 256, %s30, [#allocation6], 64, 64, 4
    $region9: #{tpu_custom_call.1} parent=1 // pred_fallthru
      _
    // Predicated region
    $region10: #{tpu_custom_call.1} parent=1 // pred_check
      _
    $region11: #{tpu_custom_call.1} parent=1 // pred_check_branch
      %37 = sbr.rel (0) target = $region13
    $region12: #{tpu_custom_call.1} parent=1 // pred_region
      %39 = dma.done [#allocation3], 128
    $region13: #{tpu_custom_call.1} parent=1 // pred_fallthru
      _
    // Predicated region
    $region14: #{tpu_custom_call.1} parent=1 // pred_check
      _
    $region15: #{tpu_custom_call.1} parent=1 // pred_check_branch
      %41 = sbr.rel (0) target = $region17
    $region16: #{tpu_custom_call.1} parent=1 // pred_region
      %43 = dma.done [#allocation6], 256
    $region17: #{tpu_custom_call.1} parent=1 // pred_fallthru
      _
    %v45 = vld [vmem:[#allocation2] sm:$0xf]
    %v46 = vld [vmem:[#allocation2 + $0x4] sm:$0xf]
    %v47 = vld [vmem:[#allocation5] sm:$0xf]
    %v48 = vld [vmem:[#allocation5 + $0x4] sm:$0xf]
    %v49 = vld [vmem:[#allocation5 + $0x8] sm:$0xf]
    %v50 = vld [vmem:[#allocation5 + $0xc] sm:$0xf]
    %v53 = vunpack.c.l.b16 %v45
    %v54 = vunpack.c.l.b16 %v46
    %v55 = vpack.c.b16 %v54, %v53
    %v60 = vunpack.c.l.b16 %v47
    %v61 = vunpack.c.l.b16 %v48
    %v62 = vunpack.c.l.b16 %v49
    %v63 = vunpack.c.l.b16 %v50
    %v64 = vpack.c.b16 %v61, %v60
    %v65 = vpack.c.b16 %v63, %v62
    %vm68 = vcmask 261120
    %v70 = vsel %vm68, %v55, 0
    %72 = vmatpush.bf16.msra.mxu0 0
    %73 = vmatpush.bf16.msra.mxu0 0
    %74 = vmatpush.bf16.msra.mxu0 0
    %75 = vmatpush.bf16.msra.mxu0 0
    %76 = vmatpush.bf16.msra.mxu0 0
    %77 = vmatpush.bf16.msra.mxu0 0
    %78 = vmatpush.bf16.msra.mxu0 %v65
    %79 = vmatpush.bf16.msra.mxu0 %v64
    %80 = vmatmul.bf16.gmra.mxu0 %v70
    %v81 = vpop.f32.mrf.mxu0
    %v82 = vadd.f32 0.0, %v81
    %v83 = vpop.f32.mrf.mxu0
    %v84 = vadd.f32 0.0, %v83
    %85 = vdwg.mxu0
    %v86 = vpack.c.bf16 %v82, %v82
    %v87 = vpack.c.bf16 %v84, %v84
    %vm88 = vcmask 781312
    %89 = vst.msk [vmem:[#allocation7] sm:$0xf] %vm88, %v86
    %90 = vst.msk [vmem:[#allocation7 + $0x4] sm:$0xf] %vm88, %v87
    // Predicated region
    $region18: #{tpu_custom_call.1} parent=1 // pred_check
      _
    $region19: #{tpu_custom_call.1} parent=1 // pred_check_branch
      %92 = sbr.rel (0) target = $region21
    $region20: #{tpu_custom_call.1} parent=1 // pred_region
      %94 = vsyncadd [#allocation4], 0
      %s95 = sshll.u32 [#allocation7], 4
      %s96 = int_to_ptr.vmem [resolvable:$true] %s95
      %s97 = sshll.u32 %s2, 4
      %s98 = int_to_ptr.hbm [resolvable:$true] %s97
      %103 = dma.vmem_to_hbm [thread:$0]  %s96, 128, %s98, [#allocation4], 64, 64, 4
    $region21: #{tpu_custom_call.1} parent=1 // pred_fallthru
      _
    // Predicated region
    $region22: #{tpu_custom_call.1} parent=1 // pred_check
      _
    $region23: #{tpu_custom_call.1} parent=1 // pred_check_branch
      %105 = sbr.rel (0) target = $region25
    $region24: #{tpu_custom_call.1} parent=1 // pred_region
      %107 = dma.done [#allocation4], 128
    $region25: #{tpu_custom_call.1} parent=1 // pred_fallthru
      _
    %108 = vsyncpa [#allocation3], 1
    %109 = vsyncpa [#allocation6], 1
    %110 = vsyncpa [#allocation4], 1

</llo_original>
